<compile_context>
chip_gen: v7x
topology: tpu7x:2x2x1
jax: 0.10.0
libtpu: 0.0.40
codegen_flags: <defaults>
</compile_context>

<pallas_src>
import jax
import jax.numpy as jnp
from jax.experimental import pallas as pl
from jax.experimental.pallas import tpu as pltpu


HP = 128  # padded hidden / output lane width (one full lane group)


def _round_up(v, m):
    return (v + m - 1) // m * m


def _make_actor_kernel(i_pad, hp):
    """3-layer MLP fused in one kernel; params come from one packed VMEM buffer."""

    def kernel(x_ref, p_ref, o_ref):
        x = x_ref[...]                                       # (TB, I_pad) f32
        # Static, 8-row-aligned, full-lane slices of the packed parameter buffer.
        w1 = p_ref[0:i_pad, :]                               # (I_pad, HP)
        w2 = p_ref[i_pad:i_pad + hp, :]                      # (HP, HP)
        w3 = p_ref[i_pad + hp:i_pad + 2 * hp, :]             # (HP, HP)
        bias = p_ref[i_pad + 2 * hp:i_pad + 2 * hp + 8, :]   # (8, HP) -> one vreg
        b1 = bias[0:1, :]
        b2 = bias[1:2, :]
        b3 = bias[2:3, :]

        h1 = jnp.tanh(jnp.dot(x, w1, preferred_element_type=jnp.float32) + b1)
        h2 = jnp.tanh(jnp.dot(h1, w2, preferred_element_type=jnp.float32) + b2)
        out = jnp.dot(h2, w3, preferred_element_type=jnp.float32) + b3
        o_ref[...] = out.astype(o_ref.dtype)                 # lane-dense (TB, 128) store

    return kernel


def pack_actor_params(params, i_pad, hp=HP):
    """Pack W1,W2,W3,b1,b2,b3 into one zero-padded (i_pad + 2*hp + 8, hp) f32 buffer.

    Weights are stored (in_features, out_features); hidden / output columns beyond
    the true sizes are zero, so the padded 128-wide math is exactly equivalent.
    """
    w1, b1 = params["w1"], params["b1"]   # (I, H), (1, H)
    w2, b2 = params["w2"], params["b2"]   # (H, H), (1, H)
    w3, b3 = params["w3"], params["b3"]   # (H, O), (1, O)
    I, H = w1.shape
    O = w3.shape[1]
    assert H <= hp and O <= hp and I <= i_pad

    rows = i_pad + 2 * hp + 8
    p = jnp.zeros((rows, hp), jnp.float32)
    p = p.at[:I, :H].set(w1.astype(jnp.float32))
    p = p.at[i_pad:i_pad + H, :H].set(w2.astype(jnp.float32))
    p = p.at[i_pad + hp:i_pad + hp + H, :O].set(w3.astype(jnp.float32))
    base = i_pad + 2 * hp
    p = p.at[base + 0, :H].set(b1.reshape(-1).astype(jnp.float32))
    p = p.at[base + 1, :H].set(b2.reshape(-1).astype(jnp.float32))
    p = p.at[base + 2, :O].set(b3.reshape(-1).astype(jnp.float32))
    return p


def actor_forward(x, params, *, tb_max=512):
    """x: (B, I) float32.  params: dict with w1,b1,w2,b2,w3,b3 (W stored as (in, out))."""
    w1, w3 = params["w1"], params["w3"]
    I, H = w1.shape
    O = w3.shape[1]
    B = x.shape[0]

    i_pad = _round_up(max(I, 1), 8)
    TB = min(tb_max, _round_up(max(B, 1), 8))   # batch tile (rows per grid step)
    b_pad = _round_up(B, TB)
    n_tiles = b_pad // TB

    # Wrapper-side padding: tail batch rows and feature padding are zeros.
    x_pad = jnp.zeros((b_pad, i_pad), jnp.float32).at[:B, :I].set(x.astype(jnp.float32))
    packed = pack_actor_params(params, i_pad, hp=HP)
    p_rows = packed.shape[0]

    flops = 2 * B * (I * H + H * H + H * O)
    transcendentals = 2 * B * H
    bytes_accessed = 4 * (x_pad.size + packed.size + b_pad * HP)

    out_padded = pl.pallas_call(
        _make_actor_kernel(i_pad, HP),
        out_shape=jax.ShapeDtypeStruct((b_pad, HP), jnp.float32),
        grid=(n_tiles,),
        in_specs=[
            pl.BlockSpec((TB, i_pad), lambda i: (i, 0)),       # batch-tiled input
            pl.BlockSpec((p_rows, HP), lambda i: (0, 0)),      # VMEM-resident params
        ],
        out_specs=pl.BlockSpec((TB, HP), lambda i: (i, 0)),    # lane-dense output slab
        compiler_params=pltpu.CompilerParams(
            dimension_semantics=("parallel",),                 # 2 TCs on v7x
        ),
        cost_estimate=pl.CostEstimate(
            flops=flops,
            transcendentals=transcendentals,
            bytes_accessed=bytes_accessed,
        ),
    )(x_pad, packed)

    return out_padded[:B, :O]


def init_actor_params(key, state_dim, action_dim, hidden=32):
    """Deterministic init mimicking PyTorch nn.Linear default:
    U(-1/sqrt(fan_in), 1/sqrt(fan_in)) for both weight and bias."""
    ks = jax.random.split(key, 6)

    def linear(kw, kb, fan_in, fan_out):
        bound = 1.0 / jnp.sqrt(jnp.float32(fan_in))
        # stored as (in, out) so the kernel computes x @ W
        w = jax.random.uniform(kw, (fan_in, fan_out), jnp.float32, -bound, bound)
        b = jax.random.uniform(kb, (1, fan_out), jnp.float32, -bound, bound)
        return w, b

    w1, b1 = linear(ks[0], ks[1], state_dim, hidden)
    w2, b2 = linear(ks[2], ks[3], hidden, hidden)
    w3, b3 = linear(ks[4], ks[5], hidden, action_dim)
    return {"w1": w1, "b1": b1, "w2": w2, "b2": b2, "w3": w3, "b3": b3}


def reference_forward(x, p):
    h1 = jnp.tanh(x @ p["w1"] + p["b1"])
    h2 = jnp.tanh(h1 @ p["w2"] + p["b2"])
    return h2 @ p["w3"] + p["b3"]


if __name__ == "__main__":
    state_dim = 8      # I
    action_dim = 4     # O

    key = jax.random.PRNGKey(0)
    k_x, k_p, k_x2 = jax.random.split(key, 3)
    params = init_actor_params(k_p, state_dim, action_dim, hidden=32)

    # Small actor-step batch (primary spec-consistent shape).
    batch = 2
    x = jax.random.normal(k_x, (batch, state_dim), jnp.float32)
    out = jax.block_until_ready(actor_forward(x, params))
    ref = reference_forward(x, params)
    assert out.shape == (batch, action_dim)
    assert jnp.allclose(out, ref, atol=1e-5, rtol=1e-5), "mismatch vs. reference (B=2)"

    # Larger ragged batch to exercise the batch grid + tail padding path.
    batch2 = 1040
    x2 = jax.random.normal(k_x2, (batch2, state_dim), jnp.float32)
    out2 = jax.block_until_ready(actor_forward(x2, params))
    ref2 = reference_forward(x2, params)
    assert out2.shape == (batch2, action_dim)
    assert jnp.allclose(out2, ref2, atol=1e-5, rtol=1e-5), "mismatch vs. reference (B=1040)"

    print("KERNEL_OK")
</pallas_src>

<mosaic_0001>
module attributes {stable_mosaic.version = 11 : i64} {
  func.func @kernel(%arg0: i32, %arg1: memref<8x8xf32, #tpu.memory_space<vmem>>, %arg2: memref<272x128xf32, #tpu.memory_space<vmem>>, %arg3: memref<8x128xf32, #tpu.memory_space<vmem>>) attributes {dimension_semantics = [#tpu.dimension_semantics<parallel>], iteration_bounds = array<i64: 1>, scalar_prefetch = 0 : i64, scratch_operands = 0 : i64, tpu.core_type = #tpu.core_type<tc>, window_params = [{transform_indices = @transform_0, window_bounds = array<i64: 8, 8>}, {pipeline_mode = #tpu.pipeline_mode<synchronous>, transform_indices = @transform_1, window_bounds = array<i64: 272, 128>}, {transform_indices = @transform_2, window_bounds = array<i64: 8, 128>}]} {
    %c0 = arith.constant 0 : index
    %c0_0 = arith.constant 0 : index
    %0 = vector.load %arg1[%c0, %c0_0] : memref<8x8xf32, #tpu.memory_space<vmem>>, vector<8x8xf32>
    %c0_1 = arith.constant 0 : index
    %c0_2 = arith.constant 0 : index
    %1 = vector.load %arg2[%c0_1, %c0_2] : memref<272x128xf32, #tpu.memory_space<vmem>>, vector<8x128xf32>
    %c8 = arith.constant 8 : index
    %c0_3 = arith.constant 0 : index
    %2 = vector.load %arg2[%c8, %c0_3] : memref<272x128xf32, #tpu.memory_space<vmem>>, vector<128x128xf32>
    %c136 = arith.constant 136 : index
    %c0_4 = arith.constant 0 : index
    %3 = vector.load %arg2[%c136, %c0_4] : memref<272x128xf32, #tpu.memory_space<vmem>>, vector<128x128xf32>
    %c264 = arith.constant 264 : index
    %c0_5 = arith.constant 0 : index
    %4 = vector.load %arg2[%c264, %c0_5] : memref<272x128xf32, #tpu.memory_space<vmem>>, vector<8x128xf32>
    %5 = vector.extract_strided_slice %4 {offsets = [0, 0], sizes = [1, 128], strides = [1, 1]} : vector<8x128xf32> to vector<1x128xf32>
    %6 = vector.extract_strided_slice %4 {offsets = [1, 0], sizes = [1, 128], strides = [1, 1]} : vector<8x128xf32> to vector<1x128xf32>
    %7 = vector.extract_strided_slice %4 {offsets = [2, 0], sizes = [1, 128], strides = [1, 1]} : vector<8x128xf32> to vector<1x128xf32>
    %cst = arith.constant dense<0.000000e+00> : vector<8x128xf32>
    %8 = tpu.matmul %0, %1, %cst {dimension_numbers = #tpu.dot_dimension_numbers<[1], [0], [0], [1], [0, 0, 1, 1], [], []>} : vector<8x8xf32>, vector<8x128xf32>, vector<8x128xf32> -> vector<8x128xf32>
    %9 = vector.broadcast %5 : vector<1x128xf32> to vector<8x128xf32>
    %10 = arith.addf %8, %9 : vector<8x128xf32>
    %11 = math.tanh %10 : vector<8x128xf32>
    %cst_6 = arith.constant dense<0.000000e+00> : vector<8x128xf32>
    %12 = tpu.matmul %11, %2, %cst_6 {dimension_numbers = #tpu.dot_dimension_numbers<[1], [0], [0], [1], [0, 0, 1, 1], [], []>} : vector<8x128xf32>, vector<128x128xf32>, vector<8x128xf32> -> vector<8x128xf32>
    %13 = vector.broadcast %6 : vector<1x128xf32> to vector<8x128xf32>
    %14 = arith.addf %12, %13 : vector<8x128xf32>
    %15 = math.tanh %14 : vector<8x128xf32>
    %cst_7 = arith.constant dense<0.000000e+00> : vector<8x128xf32>
    %16 = tpu.matmul %15, %3, %cst_7 {dimension_numbers = #tpu.dot_dimension_numbers<[1], [0], [0], [1], [0, 0, 1, 1], [], []>} : vector<8x128xf32>, vector<128x128xf32>, vector<8x128xf32> -> vector<8x128xf32>
    %17 = vector.broadcast %7 : vector<1x128xf32> to vector<8x128xf32>
    %18 = arith.addf %16, %17 : vector<8x128xf32>
    %c0_8 = arith.constant 0 : index
    %c0_9 = arith.constant 0 : index
    %19 = vector.load %arg3[%c0_8, %c0_9] : memref<8x128xf32, #tpu.memory_space<vmem>>, vector<8x128xf32>
    tpu.vector_store %arg3[%c0_8, %c0_9], %18 {strides = array<i32>} : memref<8x128xf32, #tpu.memory_space<vmem>>, vector<8x128xf32>,
    return
  }
  func.func @transform_0(%arg0: i32) -> (i32, i32) {
    %c0_i32 = arith.constant 0 : i32
    %c0_i32_0 = arith.constant 0 : i32
    return %arg0, %c0_i32 : i32, i32
  }
  func.func @transform_1(%arg0: i32) -> (i32, i32) {
    %c0_i32 = arith.constant 0 : i32
    %c0_i32_0 = arith.constant 0 : i32
    %c0_i32_1 = arith.constant 0 : i32
    return %c0_i32, %c0_i32_0 : i32, i32
  }
  func.func @transform_2(%arg0: i32) -> (i32, i32) {
    %c0_i32 = arith.constant 0 : i32
    %c0_i32_0 = arith.constant 0 : i32
    return %arg0, %c0_i32 : i32, i32
  }
}

</mosaic_0001>

<llo_original>
// kernel: tpu_custom_call.1
$region0: #{tpu_custom_call.1}
  #allocation0 [shape = 'u32[]', space=smem, size = 0x4, offset = 0x4, fixed_abs, tag = 'smem constant byte address 0x4 - core index']
  #allocation1 [shape = 'u32[144,128]{1,0:T(1,128)}', space=vmem, size = 0x12000, scoped, tag = 'internal scratch']
  %s0 = inlined_call_operand.hbm [shape: f32[8,8], index: 0, kind: input, shape index: {}]
  %s1 = inlined_call_operand.hbm [shape: f32[272,128], index: 1, kind: input, shape index: {}]
  %s2 = inlined_call_operand.hbm [shape: f32[8,128], index: 2, kind: output, shape index: {}]
  %s3 = sld [smem:[#allocation0]]
  $region26: #{tpu_custom_call.1} parent=0
    _
  %s5 = ssub.s32 1, %s3
  %s6 = scalar_select 0, %s5, %s3
  $region1: #{tpu_custom_call.1} parent=0
    #allocation2 [shape = 'u8[4096]{0}', space=vmem, size = 0x1000, scoped, tag = 'input window, operand 0, single buffered']
    #allocation3 [shape = 's32[1]{0}', space=sflag, size = 0x4, scoped, tag = 'scoped memory for tpu_custom_call.1']
    #allocation4 [shape = 's32[1]{0}', space=sflag, size = 0x4, scoped, tag = 'scoped memory for tpu_custom_call.1']
    #allocation5 [shape = 'u8[139264]{0}', space=vmem, size = 0x22000, scoped, tag = 'input window, operand 1, single buffered']
    #allocation6 [shape = 's32[1]{0}', space=sflag, size = 0x4, scoped, tag = 'scoped memory for tpu_custom_call.1']
    #allocation7 [shape = 'u8[4096]{0}', space=vmem, size = 0x1000, scoped, tag = 'output window, operand 0, single buffered']
    %7 = vsyncpa [#allocation3], 0
    %8 = vsyncpa [#allocation6], 0
    %9 = vsyncpa [#allocation4], 0
    // Predicated region
    $region2: #{tpu_custom_call.1} parent=1 // pred_check
      _
    $region3: #{tpu_custom_call.1} parent=1 // pred_check_branch
      %11 = sbr.rel (0) target = $region5
    $region4: #{tpu_custom_call.1} parent=1 // pred_region
      %s13 = ssub.s32 128, 128
      %14 = vsyncadd [#allocation3], %s13
      %s16 = sshll.u32 [#allocation2], 4
      %s17 = int_to_ptr.vmem [resolvable:$true] %s16
      %19 = dma.hbm_to_vmem [thread:$0]  %s0, 128, %s17, [#allocation3]
    $region5: #{tpu_custom_call.1} parent=1 // pred_fallthru
      _
    // Predicated region
    $region6: #{tpu_custom_call.1} parent=1 // pred_check
      _
    $region7: #{tpu_custom_call.1} parent=1 // pred_check_branch
      %21 = sbr.rel (0) target = $region9
    $region8: #{tpu_custom_call.1} parent=1 // pred_region
      %s23 = ssub.s32 4352, 4352
      %24 = vsyncadd [#allocation6], %s23
      %s25 = sshll.u32 [#allocation5], 4
      %s26 = int_to_ptr.vmem [resolvable:$true] %s25
      %31 = dma.hbm_to_vmem [thread:$0]  %s1, 4352, %s26, [#allocation6], 128, 128, 8
    $region9: #{tpu_custom_call.1} parent=1 // pred_fallthru
      _
    // Predicated region
    $region10: #{tpu_custom_call.1} parent=1 // pred_check
      _
    $region11: #{tpu_custom_call.1} parent=1 // pred_check_branch
      %33 = sbr.rel (0) target = $region13
    $region12: #{tpu_custom_call.1} parent=1 // pred_region
      %34 = dma.done [#allocation3], 128
    $region13: #{tpu_custom_call.1} parent=1 // pred_fallthru
      _
    // Predicated region
    $region14: #{tpu_custom_call.1} parent=1 // pred_check
      _
    $region15: #{tpu_custom_call.1} parent=1 // pred_check_branch
      %36 = sbr.rel (0) target = $region17
    $region16: #{tpu_custom_call.1} parent=1 // pred_region
      %37 = dma.done [#allocation6], 4352
    $region17: #{tpu_custom_call.1} parent=1 // pred_fallthru
      _
    %v38 = vld [vmem:[#allocation2] sm:$0xff]
    %v39 = vld [vmem:[#allocation5] sm:$0xff]
    %v40 = vld [vmem:[#allocation5 + $0x8] sm:$0xff]
    %v41 = vld [vmem:[#allocation5 + $0x10] sm:$0xff]
    %v42 = vld [vmem:[#allocation5 + $0x18] sm:$0xff]
    %v43 = vld [vmem:[#allocation5 + $0x20] sm:$0xff]
    %v44 = vld [vmem:[#allocation5 + $0x28] sm:$0xff]
    %v45 = vld [vmem:[#allocation5 + $0x30] sm:$0xff]
    %v46 = vld [vmem:[#allocation5 + $0x38] sm:$0xff]
    %v47 = vld [vmem:[#allocation5 + $0x40] sm:$0xff]
    %v48 = vld [vmem:[#allocation5 + $0x48] sm:$0xff]
    %v49 = vld [vmem:[#allocation5 + $0x50] sm:$0xff]
    %v50 = vld [vmem:[#allocation5 + $0x58] sm:$0xff]
    %v51 = vld [vmem:[#allocation5 + $0x60] sm:$0xff]
    %v52 = vld [vmem:[#allocation5 + $0x68] sm:$0xff]
    %v53 = vld [vmem:[#allocation5 + $0x70] sm:$0xff]
    %v54 = vld [vmem:[#allocation5 + $0x78] sm:$0xff]
    %v55 = vld [vmem:[#allocation5 + $0x80] sm:$0xff]
    %v56 = vld [vmem:[#allocation5 + $0x88] sm:$0xff]
    %v57 = vld [vmem:[#allocation5 + $0x90] sm:$0xff]
    %v58 = vld [vmem:[#allocation5 + $0x98] sm:$0xff]
    %v59 = vld [vmem:[#allocation5 + $0xa0] sm:$0xff]
    %v60 = vld [vmem:[#allocation5 + $0xa8] sm:$0xff]
    %v61 = vld [vmem:[#allocation5 + $0xb0] sm:$0xff]
    %v62 = vld [vmem:[#allocation5 + $0xb8] sm:$0xff]
    %v63 = vld [vmem:[#allocation5 + $0xc0] sm:$0xff]
    %v64 = vld [vmem:[#allocation5 + $0xc8] sm:$0xff]
    %v65 = vld [vmem:[#allocation5 + $0xd0] sm:$0xff]
    %v66 = vld [vmem:[#allocation5 + $0xd8] sm:$0xff]
    %v67 = vld [vmem:[#allocation5 + $0xe0] sm:$0xff]
    %v68 = vld [vmem:[#allocation5 + $0xe8] sm:$0xff]
    %v69 = vld [vmem:[#allocation5 + $0xf0] sm:$0xff]
    %v70 = vld [vmem:[#allocation5 + $0xf8] sm:$0xff]
    %v71 = vld [vmem:[#allocation5 + $0x100] sm:$0xff]
    %v72 = vld [vmem:[#allocation5 + $0x108] sm:$0xff]
    %v73 = vlaneseq
    %v74 = vshrl.u32 %v73, 7
    %v75 = vsub.s32 0, %v74
    %v76 = vrot.slane %v72, %v75
    %vm77 = vcmask 64512
    %v79 = vsel %vm77, %v38, 0
    %81 = vmatprep.subr.mxu0 0.0
    %82 = vmatpush1.msra.mxu0 %v39
    %83 = vmatprep.subr.mxu0 0.0
    %84 = vmatpush1.msra.mxu0 0.0
    %85 = vmatprep.subr.mxu0 0.0
    %86 = vmatpush1.msra.mxu0 0.0
    %87 = vmatprep.subr.mxu0 0.0
    %88 = vmatpush1.msra.mxu0 0.0
    %89 = vmatprep.subr.mxu0 0.0
    %90 = vmatpush1.msra.mxu0 0.0
    %91 = vmatprep.subr.mxu0 0.0
    %92 = vmatpush1.msra.mxu0 0.0
    %93 = vmatprep.subr.mxu0 0.0
    %94 = vmatpush1.msra.mxu0 0.0
    %95 = vmatprep.subr.mxu0 0.0
    %96 = vmatpush1.msra.mxu0 0.0
    %97 = vmatprep.subr.mxu0 0.0
    %98 = vmatpush1.msra.mxu0 0.0
    %99 = vmatprep.subr.mxu0 0.0
    %100 = vmatpush1.msra.mxu0 0.0
    %101 = vmatprep.subr.mxu0 0.0
    %102 = vmatpush1.msra.mxu0 0.0
    %103 = vmatprep.subr.mxu0 0.0
    %104 = vmatpush1.msra.mxu0 0.0
    %105 = vmatprep.subr.mxu0 0.0
    %106 = vmatpush1.msra.mxu0 0.0
    %107 = vmatprep.subr.mxu0 0.0
    %108 = vmatpush1.msra.mxu0 0.0
    %109 = vmatprep.subr.mxu0 0.0
    %110 = vmatpush1.msra.mxu0 0.0
    %111 = vmatprep.subr.mxu0 0.0
    %112 = vmatpush1.msra.mxu0 0.0
    %113 = vmatprep.subr.mxu0 0.0
    %114 = vmatpush1.msra.mxu0 0.0
    %115 = vmatprep.subr.mxu0 0.0
    %116 = vmatpush1.msra.mxu0 0.0
    %117 = vmatprep.subr.mxu0 0.0
    %118 = vmatpush1.msra.mxu0 0.0
    %119 = vmatprep.subr.mxu0 0.0
    %120 = vmatpush1.msra.mxu0 0.0
    %121 = vmatprep.subr.mxu0 0.0
    %122 = vmatpush1.msra.mxu0 0.0
    %123 = vmatprep.subr.mxu0 0.0
    %124 = vmatpush1.msra.mxu0 0.0
    %125 = vmatprep.subr.mxu0 0.0
    %126 = vmatpush1.msra.mxu0 0.0
    %127 = vmatprep.subr.mxu0 0.0
    %128 = vmatpush1.msra.mxu0 0.0
    %129 = vmatprep.subr.mxu0 0.0
    %130 = vmatpush1.msra.mxu0 0.0
    %131 = vmatprep.subr.mxu0 0.0
    %132 = vmatpush1.msra.mxu0 0.0
    %133 = vmatprep.subr.mxu0 0.0
    %134 = vmatpush1.msra.mxu0 0.0
    %135 = vmatprep.subr.mxu0 0.0
    %136 = vmatpush1.msra.mxu0 0.0
    %137 = vmatprep.subr.mxu0 0.0
    %138 = vmatpush1.msra.mxu0 0.0
    %139 = vmatprep.subr.mxu0 0.0
    %140 = vmatpush1.msra.mxu0 0.0
    %141 = vmatprep.subr.mxu0 0.0
    %142 = vmatpush1.msra.mxu0 0.0
    %143 = vmatprep.subr.mxu0 0.0
    %144 = vmatpush1.msra.mxu0 0.0
    %145 = vmatprep.mubr.f32.mxu0 0.0
    %146 = vmatmul.mubr.f32.gmra.mrb[0].mxu0 %v79
    %v147 = vpop.f32.mrb[0].mxu0
    %v148 = vadd.f32 %v76, %v147
    %v149 = vpop.f32.mrb[0].mxu0
    %150 = vdwg.mxu0
    %v151 = vtanh.pop %v148
    %v152 = vlaneseq
    %v153 = vshrl.u32 %v152, 7
    %v154 = vsub.s32 1, %v153
    %v155 = vrot.slane %v72, %v154
    %156 = vmatprep.subr.mxu0 0.0
    %157 = vmatpush1.msra.mxu0 %v40
    %158 = vmatprep.subr.mxu0 0.0
    %159 = vmatpush1.msra.mxu0 %v41
    %160 = vmatprep.subr.mxu0 0.0
    %161 = vmatpush1.msra.mxu0 %v42
    %162 = vmatprep.subr.mxu0 0.0
    %163 = vmatpush1.msra.mxu0 %v43
    %164 = vmatprep.subr.mxu0 0.0
    %165 = vmatpush1.msra.mxu0 %v44
    %166 = vmatprep.subr.mxu0 0.0
    %167 = vmatpush1.msra.mxu0 %v45
    %168 = vmatprep.subr.mxu0 0.0
    %169 = vmatpush1.msra.mxu0 %v46
    %170 = vmatprep.subr.mxu0 0.0
    %171 = vmatpush1.msra.mxu0 %v47
    %172 = vmatprep.subr.mxu0 0.0
    %173 = vmatpush1.msra.mxu0 %v48
    %174 = vmatprep.subr.mxu0 0.0
    %175 = vmatpush1.msra.mxu0 %v49
    %176 = vmatprep.subr.mxu0 0.0
    %177 = vmatpush1.msra.mxu0 %v50
    %178 = vmatprep.subr.mxu0 0.0
    %179 = vmatpush1.msra.mxu0 %v51
    %180 = vmatprep.subr.mxu0 0.0
    %181 = vmatpush1.msra.mxu0 %v52
    %182 = vmatprep.subr.mxu0 0.0
    %183 = vmatpush1.msra.mxu0 %v53
    %184 = vmatprep.subr.mxu0 0.0
    %185 = vmatpush1.msra.mxu0 %v54
    %186 = vmatprep.subr.mxu0 0.0
    %187 = vmatpush1.msra.mxu0 %v55
    %188 = vmatprep.subr.mxu0 0.0
    %189 = vmatpush1.msra.mxu0 0.0
    %190 = vmatprep.subr.mxu0 0.0
    %191 = vmatpush1.msra.mxu0 0.0
    %192 = vmatprep.subr.mxu0 0.0
    %193 = vmatpush1.msra.mxu0 0.0
    %194 = vmatprep.subr.mxu0 0.0
    %195 = vmatpush1.msra.mxu0 0.0
    %196 = vmatprep.subr.mxu0 0.0
    %197 = vmatpush1.msra.mxu0 0.0
    %198 = vmatprep.subr.mxu0 0.0
    %199 = vmatpush1.msra.mxu0 0.0
    %200 = vmatprep.subr.mxu0 0.0
    %201 = vmatpush1.msra.mxu0 0.0
    %202 = vmatprep.subr.mxu0 0.0
    %203 = vmatpush1.msra.mxu0 0.0
    %204 = vmatprep.subr.mxu0 0.0
    %205 = vmatpush1.msra.mxu0 0.0
    %206 = vmatprep.subr.mxu0 0.0
    %207 = vmatpush1.msra.mxu0 0.0
    %208 = vmatprep.subr.mxu0 0.0
    %209 = vmatpush1.msra.mxu0 0.0
    %210 = vmatprep.subr.mxu0 0.0
    %211 = vmatpush1.msra.mxu0 0.0
    %212 = vmatprep.subr.mxu0 0.0
    %213 = vmatpush1.msra.mxu0 0.0
    %214 = vmatprep.subr.mxu0 0.0
    %215 = vmatpush1.msra.mxu0 0.0
    %216 = vmatprep.subr.mxu0 0.0
    %217 = vmatpush1.msra.mxu0 0.0
    %218 = vmatprep.subr.mxu0 0.0
    %219 = vmatpush1.msra.mxu0 0.0
    %220 = vmatprep.mubr.f32.mxu0 0.0
    %221 = vmatmul.mubr.f32.gmra.mrb[0].mxu0 %v151
    %v222 = vpop.f32.mrb[0].mxu0
    %v223 = vadd.f32 %v155, %v222
    %v224 = vpop.f32.mrb[0].mxu0
    %225 = vdwg.mxu0
    %v226 = vtanh.pop %v223
    %v227 = vlaneseq
    %v228 = vshrl.u32 %v227, 7
    %v229 = vsub.s32 2, %v228
    %v230 = vrot.slane %v72, %v229
    %231 = vmatprep.subr.mxu0 0.0
    %232 = vmatpush1.msra.mxu0 %v56
    %233 = vmatprep.subr.mxu0 0.0
    %234 = vmatpush1.msra.mxu0 %v57
    %235 = vmatprep.subr.mxu0 0.0
    %236 = vmatpush1.msra.mxu0 %v58
    %237 = vmatprep.subr.mxu0 0.0
    %238 = vmatpush1.msra.mxu0 %v59
    %239 = vmatprep.subr.mxu0 0.0
    %240 = vmatpush1.msra.mxu0 %v60
    %241 = vmatprep.subr.mxu0 0.0
    %242 = vmatpush1.msra.mxu0 %v61
    %243 = vmatprep.subr.mxu0 0.0
    %244 = vmatpush1.msra.mxu0 %v62
    %245 = vmatprep.subr.mxu0 0.0
    %246 = vmatpush1.msra.mxu0 %v63
    %247 = vmatprep.subr.mxu0 0.0
    %248 = vmatpush1.msra.mxu0 %v64
    %249 = vmatprep.subr.mxu0 0.0
    %250 = vmatpush1.msra.mxu0 %v65
    %251 = vmatprep.subr.mxu0 0.0
    %252 = vmatpush1.msra.mxu0 %v66
    %253 = vmatprep.subr.mxu0 0.0
    %254 = vmatpush1.msra.mxu0 %v67
    %255 = vmatprep.subr.mxu0 0.0
    %256 = vmatpush1.msra.mxu0 %v68
    %257 = vmatprep.subr.mxu0 0.0
    %258 = vmatpush1.msra.mxu0 %v69
    %259 = vmatprep.subr.mxu0 0.0
    %260 = vmatpush1.msra.mxu0 %v70
    %261 = vmatprep.subr.mxu0 0.0
    %262 = vmatpush1.msra.mxu0 %v71
    %263 = vmatprep.subr.mxu0 0.0
    %264 = vmatpush1.msra.mxu0 0.0
    %265 = vmatprep.subr.mxu0 0.0
    %266 = vmatpush1.msra.mxu0 0.0
    %267 = vmatprep.subr.mxu0 0.0
    %268 = vmatpush1.msra.mxu0 0.0
    %269 = vmatprep.subr.mxu0 0.0
    %270 = vmatpush1.msra.mxu0 0.0
    %271 = vmatprep.subr.mxu0 0.0
    %272 = vmatpush1.msra.mxu0 0.0
    %273 = vmatprep.subr.mxu0 0.0
    %274 = vmatpush1.msra.mxu0 0.0
    %275 = vmatprep.subr.mxu0 0.0
    %276 = vmatpush1.msra.mxu0 0.0
    %277 = vmatprep.subr.mxu0 0.0
    %278 = vmatpush1.msra.mxu0 0.0
    %279 = vmatprep.subr.mxu0 0.0
    %280 = vmatpush1.msra.mxu0 0.0
    %281 = vmatprep.subr.mxu0 0.0
    %282 = vmatpush1.msra.mxu0 0.0
    %283 = vmatprep.subr.mxu0 0.0
    %284 = vmatpush1.msra.mxu0 0.0
    %285 = vmatprep.subr.mxu0 0.0
    %286 = vmatpush1.msra.mxu0 0.0
    %287 = vmatprep.subr.mxu0 0.0
    %288 = vmatpush1.msra.mxu0 0.0
    %289 = vmatprep.subr.mxu0 0.0
    %290 = vmatpush1.msra.mxu0 0.0
    %291 = vmatprep.subr.mxu0 0.0
    %292 = vmatpush1.msra.mxu0 0.0
    %293 = vmatprep.subr.mxu0 0.0
    %294 = vmatpush1.msra.mxu0 0.0
    %295 = vmatprep.mubr.f32.mxu0 0.0
    %296 = vmatmul.mubr.f32.gmra.mrb[0].mxu0 %v226
    %v297 = vpop.f32.mrb[0].mxu0
    %v298 = vadd.f32 %v230, %v297
    %v299 = vpop.f32.mrb[0].mxu0
    %300 = vdwg.mxu0
    %301 = vst [vmem:[#allocation7] sm:$0xff] %v298
    // Predicated region
    $region18: #{tpu_custom_call.1} parent=1 // pred_check
      _
    $region19: #{tpu_custom_call.1} parent=1 // pred_check_branch
      %303 = sbr.rel (0) target = $region21
    $region20: #{tpu_custom_call.1} parent=1 // pred_region
      %s305 = ssub.s32 128, 128
      %306 = vsyncadd [#allocation4], %s305
      %s308 = sshll.u32 [#allocation7], 4
      %s309 = int_to_ptr.vmem [resolvable:$true] %s308
      %311 = dma.vmem_to_hbm [thread:$0]  %s309, 128, %s2, [#allocation4]
    $region21: #{tpu_custom_call.1} parent=1 // pred_fallthru
      _
    // Predicated region
    $region22: #{tpu_custom_call.1} parent=1 // pred_check
      _
    $region23: #{tpu_custom_call.1} parent=1 // pred_check_branch
      %313 = sbr.rel (0) target = $region25
    $region24: #{tpu_custom_call.1} parent=1 // pred_region
      %314 = dma.done [#allocation4], 128
    $region25: #{tpu_custom_call.1} parent=1 // pred_fallthru
      _
    %315 = vsyncpa [#allocation3], 1
    %316 = vsyncpa [#allocation6], 1
    %317 = vsyncpa [#allocation4], 1

</llo_original>
